<compile_context>
chip_gen: v5e
topology: v5e:2x2
jax: 0.10.0
libtpu: 0.0.40
codegen_flags: <defaults>
</compile_context>

<pallas_src>
import jax
import jax.numpy as jnp
from jax.experimental import pallas as pl
from jax.experimental.pallas import tpu as pltpu

_LANES = 128
_SUBLANES = 8


def _head_sigmoid_kernel(w_ref, b_ref, x_ref, o_ref):
    """Fused 1x1-conv head + sigmoid on one dense pixel tile.

    w_ref: (C_out, C_in) f32 in SMEM     b_ref: (C_out,) f32 in SMEM
    x_ref: (C_in, R, 128) f32 in VMEM    o_ref: (C_out, R, 128) in VMEM
    """
    c_out, c_in = w_ref.shape
    x = x_ref[...]                                   # one dense load, (C_in, R, 128)
    for oc in range(c_out):                          # unrolled: C_out is tiny (1)
        acc = x[0] * w_ref[oc, 0] + b_ref[oc]        # dense (R, 128) VPU FMA
        for c in range(1, c_in):                     # unrolled: C_in is tiny
            acc = acc + x[c] * w_ref[oc, c]
        # sigmoid(acc) = 1 / (1 + exp(-acc)); exp and approx-reciprocal both
        # route to the EUP slot, keeping the VPU free (kernel is HBM-bound).
        e = jnp.exp(-acc)
        o_ref[oc] = pl.reciprocal(1.0 + e, approx=True).astype(o_ref.dtype)


def _target_block_bytes():
    """Per-generation input-block size target (bytes)."""
    try:
        vmem = int(pltpu.get_tpu_info().vmem_capacity_bytes)
    except Exception:  # conservative fallback if the query is unavailable
        vmem = 64 << 20
    # 128 MiB-VMEM parts (v5e/v6e): bigger blocks amortize per-step overhead.
    # 64 MiB part (v7x): smaller blocks keep double-buffering well inside VMEM.
    return (8 << 20) if vmem >= (128 << 20) else (4 << 20)


def _pick_row_tile(n_rows, c_in, *, dtype_bytes=4):
    """Rows (of 128 pixels) per block: dense (R, 128) tiles with R % 8 == 0."""
    target = _target_block_bytes()
    r = (target // (c_in * _LANES * dtype_bytes)) // _SUBLANES * _SUBLANES
    r = max(_SUBLANES, r)
    # Full extent is always legal; otherwise R is a multiple of 8 and block
    # clamping handles a partial last tile (grid uses cdiv).
    return n_rows if r >= n_rows else r


def model_with_sigmoid_out(x_nchw, conv_w, conv_b):
    """Forward pass: sigmoid(Conv2d_1x1(x)).

    x_nchw : (N, C_in, H, W) float32
    conv_w : (C_out, C_in, 1, 1)  (PyTorch Conv2d weight layout)
    conv_b : (C_out,)
    returns: (N, C_out, H, W)
    """
    N, C_in, H, W = x_nchw.shape
    C_out = conv_w.shape[0]
    P = H * W

    # Free views of the NCHW data (no transpose).  Pixels are re-blocked into
    # rows of 128 lanes so the last two block dims are a dense (R, 128) tile.
    n_rows = pl.cdiv(P, _LANES)
    P_pad = n_rows * _LANES
    x_rows = x_nchw.reshape(N, C_in, P)
    if P_pad != P:
        # Only for non-128-aligned spatial sizes (single cheap pad pass).
        x_rows = jnp.pad(x_rows, ((0, 0), (0, 0), (0, P_pad - P)))
    x4 = x_rows.reshape(N, C_in, n_rows, _LANES)

    w = conv_w.reshape(C_out, C_in).astype(jnp.float32)   # SMEM scalar table
    b = conv_b.reshape(C_out).astype(jnp.float32)         # SMEM scalar table

    R = _pick_row_tile(n_rows, C_in)
    grid = (N, pl.cdiv(n_rows, R))

    cost = pl.CostEstimate(
        flops=2 * N * C_out * C_in * P,
        transcendentals=N * C_out * P,
        bytes_accessed=4 * (N * C_in * P + N * C_out * P),
    )

    out4 = pl.pallas_call(
        _head_sigmoid_kernel,
        out_shape=jax.ShapeDtypeStruct((N, C_out, n_rows, _LANES), x_nchw.dtype),
        grid_spec=pltpu.PrefetchScalarGridSpec(
            num_scalar_prefetch=0,
            grid=grid,
            in_specs=[
                # Tiny weight/bias tables live whole in SMEM (no tiling).
                pl.BlockSpec(memory_space=pltpu.MemorySpace.SMEM),
                pl.BlockSpec(memory_space=pltpu.MemorySpace.SMEM),
                # Channel-major, dense (R, 128) pixel tile straight out of NCHW.
                pl.BlockSpec((None, C_in, R, _LANES), lambda n, t: (n, 0, t, 0)),
            ],
            out_specs=pl.BlockSpec((None, C_out, R, _LANES),
                                   lambda n, t: (n, 0, t, 0)),
        ),
        compiler_params=pltpu.CompilerParams(
            dimension_semantics=("parallel", "parallel"),
            # Double-buffered in/out stays <= ~20 MiB even at the 8 MiB block
            # target; 32 MiB scoped limit is safe on v5e/v6e/v7x.
            vmem_limit_bytes=32 * 1024 * 1024,
        ),
        cost_estimate=cost,
    )(w, b, x4)

    out_rows = out4.reshape(N, C_out, P_pad)
    if P_pad != P:
        out_rows = out_rows[:, :, :P]
    # (N, C_out, P) -> (N, C_out, H, W): free reshape, already channel-major.
    return out_rows.reshape(N, C_out, H, W)


if __name__ == "__main__":
    key = jax.random.PRNGKey(0)
    k_x, k_w, k_b = jax.random.split(key, 3)

    N, C_in, H, W = 2, 4, 16, 16
    C_out = 1  # single-channel segmentation mask logits

    x = jax.random.normal(k_x, (N, C_in, H, W), dtype=jnp.float32)
    conv_w = jax.random.normal(k_w, (C_out, C_in, 1, 1), dtype=jnp.float32) * 0.1
    conv_b = jax.random.normal(k_b, (C_out,), dtype=jnp.float32) * 0.1

    out = model_with_sigmoid_out(x, conv_w, conv_b)
    out = jax.block_until_ready(out)

    # Reference check in plain JAX (conv1x1 + bias + sigmoid).  Tolerance is
    # loosened (5e-3) because the kernel uses the approx hardware reciprocal
    # for the sigmoid denominator; structural errors would be far larger.
    ref_logits = jnp.einsum("nchw,oc->nohw", x, conv_w.reshape(C_out, C_in)) \
        + conv_b.reshape(1, C_out, 1, 1)
    ref = jax.nn.sigmoid(ref_logits)
    assert out.shape == (N, C_out, H, W)
    assert jnp.allclose(out, ref, atol=5e-3, rtol=5e-3)

    print("KERNEL_OK")
</pallas_src>

<mosaic_0001>
module attributes {stable_mosaic.version = 11 : i64} {
  func.func @_head_sigmoid_kernel(%arg0: i32, %arg1: i32, %arg2: memref<1x4xf32, #tpu.memory_space<smem>>, %arg3: memref<1xf32, #tpu.memory_space<smem>>, %arg4: memref<1x4x2x128xf32, #tpu.memory_space<vmem>>, %arg5: memref<1x1x2x128xf32, #tpu.memory_space<vmem>>) attributes {dimension_semantics = [#tpu.dimension_semantics<parallel>, #tpu.dimension_semantics<parallel>], iteration_bounds = array<i64: 2, 1>, scalar_prefetch = 0 : i64, scratch_operands = 0 : i64, tpu.core_type = #tpu.core_type<tc>, window_params = [{transform_indices = @transform_0, window_bounds = array<i64: 1, 4>}, {transform_indices = @transform_1, window_bounds = array<i64: 1>}, {transform_indices = @transform_2, window_bounds = array<i64: 1, 4, 2, 128>}, {transform_indices = @transform_3, window_bounds = array<i64: 1, 1, 2, 128>}]} {
    %c0 = arith.constant 0 : index
    %c0_0 = arith.constant 0 : index
    %c0_1 = arith.constant 0 : index
    %c0_2 = arith.constant 0 : index
    %0 = vector.load %arg4[%c0, %c0_0, %c0_1, %c0_2] : memref<1x4x2x128xf32, #tpu.memory_space<vmem>>, vector<1x4x2x128xf32>
    %1 = vector.shape_cast %0 : vector<1x4x2x128xf32> to vector<4x2x128xf32>
    %2 = vector.extract_strided_slice %1 {offsets = [0, 0, 0], sizes = [1, 2, 128], strides = [1, 1, 1]} : vector<4x2x128xf32> to vector<1x2x128xf32>
    %3 = vector.shape_cast %2 : vector<1x2x128xf32> to vector<2x128xf32>
    %c0_3 = arith.constant 0 : index
    %c0_4 = arith.constant 0 : index
    %4 = memref.load %arg2[%c0_3, %c0_4] : memref<1x4xf32, #tpu.memory_space<smem>>
    %5 = vector.broadcast %4 : f32 to vector<2x128xf32>
    %6 = arith.mulf %3, %5 : vector<2x128xf32>
    %c0_5 = arith.constant 0 : index
    %7 = memref.load %arg3[%c0_5] : memref<1xf32, #tpu.memory_space<smem>>
    %8 = vector.broadcast %7 : f32 to vector<2x128xf32>
    %9 = arith.addf %6, %8 : vector<2x128xf32>
    %10 = vector.extract_strided_slice %1 {offsets = [1, 0, 0], sizes = [1, 2, 128], strides = [1, 1, 1]} : vector<4x2x128xf32> to vector<1x2x128xf32>
    %11 = vector.shape_cast %10 : vector<1x2x128xf32> to vector<2x128xf32>
    %c0_6 = arith.constant 0 : index
    %c1 = arith.constant 1 : index
    %12 = memref.load %arg2[%c0_6, %c1] : memref<1x4xf32, #tpu.memory_space<smem>>
    %13 = vector.broadcast %12 : f32 to vector<2x128xf32>
    %14 = arith.mulf %11, %13 : vector<2x128xf32>
    %15 = arith.addf %9, %14 : vector<2x128xf32>
    %16 = vector.extract_strided_slice %1 {offsets = [2, 0, 0], sizes = [1, 2, 128], strides = [1, 1, 1]} : vector<4x2x128xf32> to vector<1x2x128xf32>
    %17 = vector.shape_cast %16 : vector<1x2x128xf32> to vector<2x128xf32>
    %c0_7 = arith.constant 0 : index
    %c2 = arith.constant 2 : index
    %18 = memref.load %arg2[%c0_7, %c2] : memref<1x4xf32, #tpu.memory_space<smem>>
    %19 = vector.broadcast %18 : f32 to vector<2x128xf32>
    %20 = arith.mulf %17, %19 : vector<2x128xf32>
    %21 = arith.addf %15, %20 : vector<2x128xf32>
    %22 = vector.extract_strided_slice %1 {offsets = [3, 0, 0], sizes = [1, 2, 128], strides = [1, 1, 1]} : vector<4x2x128xf32> to vector<1x2x128xf32>
    %23 = vector.shape_cast %22 : vector<1x2x128xf32> to vector<2x128xf32>
    %c0_8 = arith.constant 0 : index
    %c3 = arith.constant 3 : index
    %24 = memref.load %arg2[%c0_8, %c3] : memref<1x4xf32, #tpu.memory_space<smem>>
    %25 = vector.broadcast %24 : f32 to vector<2x128xf32>
    %26 = arith.mulf %23, %25 : vector<2x128xf32>
    %27 = arith.addf %21, %26 : vector<2x128xf32>
    %cst = arith.constant 0.000000e+00 : f32
    %28 = vector.broadcast %cst : f32 to vector<2x128xf32>
    %29 = arith.subf %28, %27 : vector<2x128xf32>
    %30 = math.exp %29 : vector<2x128xf32>
    %cst_9 = arith.constant 1.000000e+00 : f32
    %31 = vector.broadcast %cst_9 : f32 to vector<2x128xf32>
    %32 = arith.addf %31, %30 : vector<2x128xf32>
    %33 = tpu.reciprocal %32 {approx = true} : vector<2x128xf32> -> vector<2x128xf32>
    %c0_10 = arith.constant 0 : index
    %c0_11 = arith.constant 0 : index
    %c0_12 = arith.constant 0 : index
    %c0_13 = arith.constant 0 : index
    %34 = vector.load %arg5[%c0_10, %c0_11, %c0_12, %c0_13] : memref<1x1x2x128xf32, #tpu.memory_space<vmem>>, vector<1x1x2x128xf32>
    %35 = vector.shape_cast %34 : vector<1x1x2x128xf32> to vector<2x128xf32>
    %36 = vector.shape_cast %33 : vector<2x128xf32> to vector<1x1x2x128xf32>
    tpu.vector_store %arg5[%c0_10, %c0_11, %c0_12, %c0_13], %36 {strides = array<i32>} : memref<1x1x2x128xf32, #tpu.memory_space<vmem>>, vector<1x1x2x128xf32>,
    return
  }
  func.func @transform_0(%arg0: i32, %arg1: i32) -> (i32, i32) {
    %c0_i32 = arith.constant 0 : i32
    %c0_i32_0 = arith.constant 0 : i32
    %c0_i32_1 = arith.constant 0 : i32
    return %c0_i32, %c0_i32_0 : i32, i32
  }
  func.func @transform_1(%arg0: i32, %arg1: i32) -> i32 {
    %c0_i32 = arith.constant 0 : i32
    %c0_i32_0 = arith.constant 0 : i32
    return %c0_i32 : i32
  }
  func.func @transform_2(%arg0: i32, %arg1: i32) -> (i32, i32, i32, i32) {
    %c0_i32 = arith.constant 0 : i32
    %c0_i32_0 = arith.constant 0 : i32
    %c0_i32_1 = arith.constant 0 : i32
    return %arg0, %c0_i32, %arg1, %c0_i32_0 : i32, i32, i32, i32
  }
  func.func @transform_3(%arg0: i32, %arg1: i32) -> (i32, i32, i32, i32) {
    %c0_i32 = arith.constant 0 : i32
    %c0_i32_0 = arith.constant 0 : i32
    %c0_i32_1 = arith.constant 0 : i32
    return %arg0, %c0_i32, %arg1, %c0_i32_0 : i32, i32, i32, i32
  }
}

</mosaic_0001>

<llo_original>
// kernel: tpu_custom_call.1
$region0: #{tpu_custom_call.1}
  #allocation0 [shape = 'u32[]', space=smem, size = 0x4, offset = 0x4, fixed_abs, tag = 'smem constant byte address 0x4 - core index']
  #allocation1 [shape = 'u32[72,128]{1,0:T(1,128)}', space=vmem, size = 0x9000, scoped, tag = 'internal scratch']
  #allocation2 [shape = 'f32[1]{0:T(128)S(6)}', space=smem, size = 0x200, scoped, tag = 'scoped memory for tpu_custom_call.1']
  %s0 = inlined_call_operand.vmem [shape: f32[1,4], index: 0, kind: input, shape index: {}]
  %s1 = inlined_call_operand.<no memory space> [shape: f32[1], index: 1, kind: input, shape index: {}]
  %s2 = inlined_call_operand.hbm [shape: f32[2,4,2,128], index: 2, kind: input, shape index: {}]
  %s3 = inlined_call_operand.hbm [shape: f32[2,1,2,128], index: 3, kind: output, shape index: {}]
  %s4 = sld [smem:[#allocation0]]
  $region53: #{tpu_custom_call.1} parent=0
    _
  %s6 = ssub.s32 1, %s4
  %s7 = scalar_select 0, %s6, %s4
  %8 = sst [smem:[#allocation2]] %s1
  $region1: #{tpu_custom_call.1} parent=0
    #allocation3 [shape = 'u8[512]{0}', space=smem, size = 0x200, scoped, tag = 'input window, operand 0, single buffered']
    #allocation4 [shape = 's32[2]{0}', space=sflag, size = 0x8, scoped, tag = 'scoped memory for tpu_custom_call.1']
    #allocation5 [shape = 's32[2]{0}', space=sflag, size = 0x8, scoped, tag = 'scoped memory for tpu_custom_call.1']
    #allocation6 [shape = 's32[2]{0}', space=sflag, size = 0x8, scoped, tag = 'scoped memory for tpu_custom_call.1']
    #allocation7 [shape = 'u8[8192]{0}', space=vmem, size = 0x2000, scoped, tag = 'input window, operand 2']
    #allocation8 [shape = 'u8[2048]{0}', space=vmem, size = 0x800, scoped, tag = 'output window, operand 0']
    %9 = vsyncpa [#allocation6], 0
    %10 = vsyncpa [#allocation4], 0
    %s11 = scalar_lea.sflag [#allocation4], 1
    %12 = vsyncpa %s11, 0
    %13 = vsyncpa [#allocation5], 0
    %s14 = scalar_lea.sflag [#allocation5], 1
    %15 = vsyncpa %s14, 0
    loop: start=0, step=1, limit=4
    $region2: #{tpu_custom_call.1} parent=1 // loop_pre_header
      _
    $region3: #{tpu_custom_call.1} parent=1 // loop_header
      %s17 = sphi 0, %s21
      %p18 = scmp.ge.s32.totalorder %s17, 4
      %s24 = sphi 0, %s36
      %s25 = sphi 0, %s32
      %s26 = sphi 0, %s24
      %s27 = sphi 0, %s25
      %s28 = sphi 0, %s26
      %s29 = sphi 0, %s27
      %s37 = sphi 0, %s37
      %s39 = sphi 0, %s37
      %s40 = sphi 0, %s39
      %s54 = sphi 0, %s40
      %s58 = sphi 0, %s58
      %s60 = sphi 0, %s58
      %s61 = sphi 0, %s60
      %s75 = sphi 0, %s61
      %s83 = sphi 0, %s85
      %s86 = sphi 0, %s83
      %s87 = sphi 0, %s86
      %s103 = sphi 0, %s87
      %s111 = sphi 0, %s113
      %s114 = sphi 0, %s111
      %s115 = sphi 0, %s114
      %s131 = sphi 0, %s115
    $region4: #{tpu_custom_call.1} parent=1 // loop_header_branch
      %20 = sbr.rel (%p18) target = $region8
    $region5: #{tpu_custom_call.1} parent=1 // loop_body
      %s22 = ssub.s32 %s17, 1
      %s23 = ssub.s32 %s17, 2
      %s30 = sadd.s32 1, %s25
      %p31 = scmp.ge.s32.totalorder %s30, 1
      %s32 = scalar_select %p31, 0, %s30
      %s33 = sadd.s32 1, %s24
      %s34 = scalar_select %p31, %s33, %s24
      %p35 = scmp.ge.s32.totalorder %s34, 2
      %s36 = scalar_select %p35, 0, %s34
      %s38 = sadd.s32 %s37, 1
      %p41 = scmp.eq.s32.totalorder %s17, 1
      %p42 = scmp.ne.s32.totalorder %s37, %s39
      %p43 = scmp.eq.s32.totalorder %s17, 0
      %p44 = por %p42, %p43
      %p45 = scmp.ne.s32.totalorder %s37, %s39
      %p46 = scmp.eq.s32.totalorder %s22, 1
      %p47 = por %p45, %p46
      %p48 = scmp.ne.s32.totalorder %s39, %s40
      %p49 = scmp.eq.s32.totalorder %s22, 0
      %p50 = por %p48, %p49
      %p51 = scmp.ne.s32.totalorder %s39, %s40
      %p52 = scmp.eq.s32.totalorder %s23, 1
      %p53 = por %p51, %p52
      %p55 = scmp.ne.s32.totalorder %s40, %s54
      %p56 = scmp.eq.s32.totalorder %s23, 0
      %p57 = por %p55, %p56
      %s59 = sadd.s32 %s58, 1
      %p62 = scmp.eq.s32.totalorder %s17, 1
      %p63 = scmp.ne.s32.totalorder %s58, %s60
      %p64 = scmp.eq.s32.totalorder %s17, 0
      %p65 = por %p63, %p64
      %p66 = scmp.ne.s32.totalorder %s58, %s60
      %p67 = scmp.eq.s32.totalorder %s22, 1
      %p68 = por %p66, %p67
      %p69 = scmp.ne.s32.totalorder %s60, %s61
      %p70 = scmp.eq.s32.totalorder %s22, 0
      %p71 = por %p69, %p70
      %p72 = scmp.ne.s32.totalorder %s60, %s61
      %p73 = scmp.eq.s32.totalorder %s23, 1
      %p74 = por %p72, %p73
      %p76 = scmp.ne.s32.totalorder %s61, %s75
      %p77 = scmp.eq.s32.totalorder %s23, 0
      %p78 = por %p76, %p77
      %s79 = ssub.s32 %s24, %s36
      %s80 = ssub.s32 %s25, %s32
      %s81 = sor.u32 %s79, %s80
      %p82 = scmp.eq.s32.totalorder %s81, 0
      %s84 = sadd.s32 %s83, 1
      %s85 = scalar_select %p82, %s83, %s84
      %p88 = pneg %p82
      %p89 = scmp.eq.s32.totalorder %s17, 1
      %p90 = por %p88, %p89
      %p91 = scmp.ne.s32.totalorder %s83, %s86
      %p92 = scmp.eq.s32.totalorder %s17, 0
      %p93 = por %p91, %p92
      %p94 = scmp.ne.s32.totalorder %s83, %s86
      %p95 = scmp.eq.s32.totalorder %s22, 1
      %p96 = por %p94, %p95
      %p97 = scmp.ne.s32.totalorder %s86, %s87
      %p98 = scmp.eq.s32.totalorder %s22, 0
      %p99 = por %p97, %p98
      %p100 = scmp.ne.s32.totalorder %s86, %s87
      %p101 = scmp.eq.s32.totalorder %s23, 1
      %p102 = por %p100, %p101
      %p104 = scmp.ne.s32.totalorder %s87, %s103
      %p105 = scmp.eq.s32.totalorder %s23, 0
      %p106 = por %p104, %p105
      %s107 = ssub.s32 %s24, %s36
      %s108 = ssub.s32 %s25, %s32
      %s109 = sor.u32 %s107, %s108
      %p110 = scmp.eq.s32.totalorder %s109, 0
      %s112 = sadd.s32 %s111, 1
      %s113 = scalar_select %p110, %s111, %s112
      %p116 = pneg %p110
      %p117 = scmp.eq.s32.totalorder %s17, 1
      %p118 = por %p116, %p117
      %p119 = scmp.ne.s32.totalorder %s111, %s114
      %p120 = scmp.eq.s32.totalorder %s17, 0
      %p121 = por %p119, %p120
      %p122 = scmp.ne.s32.totalorder %s111, %s114
      %p123 = scmp.eq.s32.totalorder %s22, 1
      %p124 = por %p122, %p123
      %p125 = scmp.ne.s32.totalorder %s114, %s115
      %p126 = scmp.eq.s32.totalorder %s22, 0
      %p127 = por %p125, %p126
      %p128 = scmp.ne.s32.totalorder %s114, %s115
      %p129 = scmp.eq.s32.totalorder %s23, 1
      %p130 = por %p128, %p129
      %p132 = scmp.ne.s32.totalorder %s115, %s131
      %p133 = scmp.eq.s32.totalorder %s23, 0
      %p134 = por %p132, %p133
      %p135 = scmp.le.s32.totalorder 1, %s17
      %p136 = scmp.lt.s32.totalorder %s17, 3
      %p137 = pnand %p135, %p136
      %p138 = pneg %p137
      // Predicated region
      $region9: #{tpu_custom_call.1} parent=5 // pred_check
        _
      $region10: #{tpu_custom_call.1} parent=5 // pred_check_branch
        %140 = sbr.rel (%p137) target = $region12
      $region11: #{tpu_custom_call.1} parent=5 // pred_region
        %s141 = ssub.s32 %s17, 1
        // Predicated region
        $region13: #{tpu_custom_call.1} parent=11 // pred_check
          %p142 = pneg %p50
        $region14: #{tpu_custom_call.1} parent=11 // pred_check_branch
          %144 = sbr.rel (%p142) target = $region16
        $region15: #{tpu_custom_call.1} parent=11 // pred_region
          %146 = vsyncadd [#allocation6], 0
          %s148 = sshll.u32 %s0, 4
          %s149 = int_to_ptr.vmem [resolvable:$true] %s148
          %151 = dma.vmem_to_smem %s149, 16, [#allocation3], [#allocation6]
        $region16: #{tpu_custom_call.1} parent=11 // pred_fallthru
          _
        // Predicated region
        $region17: #{tpu_custom_call.1} parent=11 // pred_check
          %p152 = pneg %p71
        $region18: #{tpu_custom_call.1} parent=11 // pred_check_branch
          %154 = sbr.rel (%p152) target = $region20
        $region19: #{tpu_custom_call.1} parent=11 // pred_region
          _
        $region20: #{tpu_custom_call.1} parent=11 // pred_fallthru
          _
      $region12: #{tpu_custom_call.1} parent=5 // pred_fallthru
        _
      %p155 = scmp.lt.s32.totalorder %s17, 2
      // Predicated region
      $region21: #{tpu_custom_call.1} parent=5 // pred_check
        %p156 = pneg %p155
      $region22: #{tpu_custom_call.1} parent=5 // pred_check_branch
        %158 = sbr.rel (%p156) target = $region24
      $region23: #{tpu_custom_call.1} parent=5 // pred_region
        // Predicated region
        $region25: #{tpu_custom_call.1} parent=23 // pred_check
          %p159 = pneg %p93
        $region26: #{tpu_custom_call.1} parent=23 // pred_check_branch
          %161 = sbr.rel (%p159) target = $region28
        $region27: #{tpu_custom_call.1} parent=23 // pred_region
          %s162 = sand.u32 %s83, 1
          %s163 = scalar_lea.sflag [#allocation4], %s162
          %s164 = sand.u32 %s83, 1
          %s165 = smul.addr %s164, 8
          %s166 = scalar_lea.vmem [#allocation7], %s165
          %168 = vsyncadd %s163, 0
          %s169 = smul.addr %s24, 4
          %s170 = sadd.s32 %s25, %s169
          %s171 = smul.addr %s170, 2
          %s172 = scalar_lea.hbm %s2, %s171
          %s173 = sshll.u32 %s172, 4
          %s174 = int_to_ptr.hbm [resolvable:$true] %s173
          %s175 = sshll.u32 %s166, 4
          %s176 = int_to_ptr.vmem [resolvable:$true] %s175
          %181 = dma.hbm_to_vmem [thread:$0]  %s174, 128, %s176, %s163, 32, 32, 2
        $region28: #{tpu_custom_call.1} parent=23 // pred_fallthru
          _
      $region24: #{tpu_custom_call.1} parent=5 // pred_fallthru
        _
      %p182 = scmp.le.s32.totalorder 1, %s17
      %p183 = scmp.lt.s32.totalorder %s17, 3
      %p184 = pnand %p182, %p183
      %p185 = pneg %p184
      // Predicated region
      $region29: #{tpu_custom_call.1} parent=5 // pred_check
        _
      $region30: #{tpu_custom_call.1} parent=5 // pred_check_branch
        %187 = sbr.rel (%p184) target = $region32
      $region31: #{tpu_custom_call.1} parent=5 // pred_region
        %s188 = ssub.s32 %s17, 1
        // Predicated region
        $region33: #{tpu_custom_call.1} parent=31 // pred_check
          %p189 = pneg %p50
        $region34: #{tpu_custom_call.1} parent=31 // pred_check_branch
          %191 = sbr.rel (%p189) target = $region36
        $region35: #{tpu_custom_call.1} parent=31 // pred_region
          %193 = dma.done [#allocation6], 16
        $region36: #{tpu_custom_call.1} parent=31 // pred_fallthru
          _
        %s194 = sand.u32 %s86, 1
        %s195 = scalar_lea.sflag [#allocation4], %s194
        %s196 = sand.u32 %s86, 1
        %s197 = smul.addr %s196, 8
        %s198 = scalar_lea.vmem [#allocation7], %s197
        // Predicated region
        $region37: #{tpu_custom_call.1} parent=31 // pred_check
          %p199 = pneg %p99
        $region38: #{tpu_custom_call.1} parent=31 // pred_check_branch
          %201 = sbr.rel (%p199) target = $region40
        $region39: #{tpu_custom_call.1} parent=31 // pred_region
          %203 = dma.done %s195, 128
        $region40: #{tpu_custom_call.1} parent=31 // pred_fallthru
          _
        %204 = sfence
        %p205 = pneg %p50
        %p206 = pneg %p47
        %p207 = pneg %p71
        %p208 = pneg %p68
        %s209 = sand.u32 %s86, 1
        %s210 = scalar_lea.sflag [#allocation4], %s209
        %s211 = sand.u32 %s86, 1
        %s212 = smul.addr %s211, 8
        %s213 = scalar_lea.vmem [#allocation7], %s212
        %p214 = pneg %p99
        %p215 = pneg %p96
        %p216 = pneg %p127
        %p217 = pneg %p124
        %s218 = sand.u32 %s114, 1
        %s219 = scalar_lea.sflag [#allocation5], %s218
        %s220 = sand.u32 %s114, 1
        %s221 = smul.addr %s220, 2
        %s222 = scalar_lea.vmem [#allocation8], %s221
        %v223 = vld [vmem:[%s198] sm:$0x3]
        %v224 = vld [vmem:[%s198 + $0x2] sm:$0x3]
        %v225 = vld [vmem:[%s198 + $0x4] sm:$0x3]
        %v226 = vld [vmem:[%s198 + $0x6] sm:$0x3]
        %s227 = sld [smem:[#allocation3]]
        %v228 = vstv %s227
        %v229 = vmul.f32 %v223, %v228
        %s230 = sld [smem:[#allocation2]]
        %v231 = vstv %s230
        %v232 = vadd.f32 %v229, %v231
        %s233 = sld [smem:[#allocation3 + $0x1]]
        %v234 = vstv %s233
        %v235 = vmul.f32 %v224, %v234
        %v236 = vadd.f32 %v232, %v235
        %s237 = sld [smem:[#allocation3 + $0x2]]
        %v238 = vstv %s237
        %v239 = vmul.f32 %v225, %v238
        %v240 = vadd.f32 %v236, %v239
        %s241 = sld [smem:[#allocation3 + $0x3]]
        %v242 = vstv %s241
        %v243 = vmul.f32 %v226, %v242
        %v244 = vadd.f32 %v240, %v243
        %v245 = vsub.f32 0.0, %v244
        %v246 = vmul.f32 %v245, 1.442695
        %v247 = vpow.pop %v246
        %v248 = vadd.f32 %v247, 1.0
        %v249 = vrcp.pop %v248
        %250 = vst [vmem:[%s222] sm:$0x3] %v249
        %s251 = sand.u32 %s114, 1
        %s252 = scalar_lea.sflag [#allocation5], %s251
        %s253 = sand.u32 %s114, 1
        %s254 = smul.addr %s253, 2
        %s255 = scalar_lea.vmem [#allocation8], %s254
        // Predicated region
        $region41: #{tpu_custom_call.1} parent=31 // pred_check
          %p256 = pneg %p124
        $region42: #{tpu_custom_call.1} parent=31 // pred_check_branch
          %258 = sbr.rel (%p256) target = $region44
        $region43: #{tpu_custom_call.1} parent=31 // pred_region
          %260 = vsyncadd %s252, 0
          %s261 = sadd.s32 %s27, %s26
          %s262 = smul.addr %s261, 2
          %s263 = scalar_lea.hbm %s3, %s262
          %s265 = sshll.u32 %s255, 4
          %s266 = int_to_ptr.vmem [resolvable:$true] %s265
          %s267 = sshll.u32 %s263, 4
          %s268 = int_to_ptr.hbm [resolvable:$true] %s267
          %270 = dma.vmem_to_hbm [thread:$0]  %s266, 32, %s268, %s252
        $region44: #{tpu_custom_call.1} parent=31 // pred_fallthru
          _
      $region32: #{tpu_custom_call.1} parent=5 // pred_fallthru
        _
      %p271 = scmp.le.s32.totalorder 2, %s17
      // Predicated region
      $region45: #{tpu_custom_call.1} parent=5 // pred_check
        %p272 = pneg %p271
      $region46: #{tpu_custom_call.1} parent=5 // pred_check_branch
        %274 = sbr.rel (%p272) target = $region48
      $region47: #{tpu_custom_call.1} parent=5 // pred_region
        %s275 = ssub.s32 %s17, 2
        // Predicated region
        $region49: #{tpu_custom_call.1} parent=47 // pred_check
          %p276 = pneg %p130
        $region50: #{tpu_custom_call.1} parent=47 // pred_check_branch
          %278 = sbr.rel (%p276) target = $region52
        $region51: #{tpu_custom_call.1} parent=47 // pred_region
          %s279 = sand.u32 %s115, 1
          %s280 = scalar_lea.sflag [#allocation5], %s279
          %s281 = sand.u32 %s115, 1
          %s282 = smul.addr %s281, 2
          %s283 = scalar_lea.vmem [#allocation8], %s282
          %285 = dma.done %s280, 32
        $region52: #{tpu_custom_call.1} parent=47 // pred_fallthru
          _
      $region48: #{tpu_custom_call.1} parent=5 // pred_fallthru
        _
    $region6: #{tpu_custom_call.1} parent=1 // loop_footer
      %s21 = sadd.s32 1, %s17
    $region7: #{tpu_custom_call.1} parent=1 // loop_footer_branch
      %16 = sbr.rel target = $region3
    $region8: #{tpu_custom_call.1} parent=1 // loop_exit
      _
    %286 = vsyncpa [#allocation4], 1
    %s287 = scalar_lea.sflag [#allocation4], 1
    %288 = vsyncpa %s287, 1
    %289 = vsyncpa [#allocation5], 1
    %s290 = scalar_lea.sflag [#allocation5], 1
    %291 = vsyncpa %s290, 1
    %292 = vsyncpa [#allocation6], 1
    %s293 = scalar_lea.sflag [#allocation6], 1
    %294 = vsyncpa %s293, 1

</llo_original>
